<compile_context>
chip_gen: v7x
topology: tpu7x:2x2x1
jax: 0.10.0
libtpu: 0.0.40
codegen_flags: <defaults>
</compile_context>

<pallas_src>
import functools

import jax
import jax.numpy as jnp
from jax.experimental import pallas as pl
from jax.experimental.pallas import tpu as pltpu


_BLOCK_BYTES = 4 * 1024 * 1024        # per pipeline buffer; ~16 MiB total with
                                      # double-buffered in+out on every TPU gen
_VMEM_LIMIT_BYTES = 32 * 1024 * 1024  # raise v5e's 16 MiB scoped default


def _round_down(x: int, m: int) -> int:
    return (x // m) * m


def _sublane_multiple(itemsize: int) -> int:
    # f32 packs (8,128) per vreg, bf16 (16,128), int8/fp8 (32,128).
    return max(8, 32 // itemsize)


def _segment_allreduce_lanes(x, seg: int, op):
    """All-reduce `op` within each contiguous `seg`-lane segment of the last axis.

    `seg` must be a power of two that divides the (128-multiple) lane extent.
    Implemented as a log2(seg)-step XOR-butterfly on the XLU (pltpu.roll); every
    lane of a segment ends up holding the segment's reduction, so no
    broadcast-back is needed.  Selected partners never cross segment (or array)
    boundaries because lane j pairs with lane j ^ s and s < seg.
    """
    n = x.shape[-1]
    lane = jax.lax.broadcasted_iota(jnp.int32, x.shape, x.ndim - 1)
    s = 1
    while s < seg:
        up = pltpu.roll(x, n - s, axis=x.ndim - 1)    # up[j]   = x[j + s]
        down = pltpu.roll(x, s, axis=x.ndim - 1)      # down[j] = x[j - s]
        partner = jnp.where((lane & s) == 0, up, down)  # lane j <-> lane j ^ s
        x = op(x, partner)
        s *= 2
    return x


def _taylor_terms(x, n_terms: int):
    # Horner form of 1 + x + x^2/2! + ... ; multiply by 1/k (no divides).
    taylor = jnp.ones_like(x)
    for k in range(n_terms - 1, 0, -1):
        taylor = taylor * (x * (1.0 / float(k))) + 1.0
    return taylor


def _normalize(taylor, denom, out_dtype):
    inv = pl.reciprocal(denom, approx=True)   # EUP slot
    inv = inv * (2.0 - denom * inv)           # one Newton refinement
    return jnp.clip(taylor * inv, 1e-6, 1.0 - 1e-6).astype(out_dtype)


def _rows_kernel(x_ref, o_ref, *, n_terms: int):
    """Reduction over the (full) last axis of the tile."""
    x = x_ref[...].astype(jnp.float32)
    x = x - jnp.max(x, axis=-1, keepdims=True)
    taylor = _taylor_terms(x, n_terms)
    denom = jnp.sum(taylor, axis=-1, keepdims=True)
    o_ref[...] = _normalize(taylor, denom, o_ref.dtype)


def _packed_kernel(x_ref, o_ref, *, n_terms: int, seg: int):
    """Lane-dense tile: `seg` consecutive lanes == one logical softmax row."""
    x = x_ref[...].astype(jnp.float32)
    x = x - _segment_allreduce_lanes(x, seg, jnp.maximum)
    taylor = _taylor_terms(x, n_terms)
    denom = _segment_allreduce_lanes(taylor, seg, jnp.add)
    o_ref[...] = _normalize(taylor, denom, o_ref.dtype)


def softmax_taylor_pallas(x: jax.Array, dim: int = -1, n_terms: int = 3) -> jax.Array:
    """Taylor-softmax along `dim` (matches the torch SoftmaxTaylor forward)."""
    if dim not in (-1, x.ndim - 1):
        xm = jnp.moveaxis(x, dim, -1)
        out = softmax_taylor_pallas(xm, dim=-1, n_terms=n_terms)
        return jnp.moveaxis(out, -1, dim)
    if x.size == 0:
        return x

    orig_shape = x.shape
    D = int(orig_shape[-1])
    M = 1
    for s in orig_shape[:-1]:
        M *= int(s)
    x2d = x.reshape(M, D)

    itemsize = x.dtype.itemsize
    sub = _sublane_multiple(itemsize)
    cparams = pltpu.CompilerParams(
        dimension_semantics=("parallel",),
        vmem_limit_bytes=_VMEM_LIMIT_BYTES,
    )

    packable = (2 <= D < 128) and (128 % D == 0) and (M % (128 // D) == 0)
    if packable:
        # Lane-dense packing: free contiguous reshape, no HBM copy.
        G = 128 // D
        rows = M // G
        xp = x2d.reshape(rows, 128)

        tm = max(sub, _round_down(_BLOCK_BYTES // (128 * itemsize), sub))
        TM = rows if tm >= rows else tm

        out_p = pl.pallas_call(
            functools.partial(_packed_kernel, n_terms=n_terms, seg=D),
            out_shape=jax.ShapeDtypeStruct((rows, 128), x.dtype),
            grid_spec=pltpu.PrefetchScalarGridSpec(
                num_scalar_prefetch=0,
                grid=(pl.cdiv(rows, TM),),
                in_specs=[pl.BlockSpec((TM, 128), lambda i: (i, 0))],
                out_specs=pl.BlockSpec((TM, 128), lambda i: (i, 0)),
            ),
            compiler_params=cparams,
        )(xp)
        out2d = out_p.reshape(M, D)   # free contiguous reshape back
    else:
        # General path: row-tiled, reduction over the (full) lane axis.
        d_lane = ((D + 127) // 128) * 128   # VMEM lane footprint of one row
        tm = max(sub, _round_down(_BLOCK_BYTES // (d_lane * itemsize), sub))
        TM = M if tm >= M else tm

        out2d = pl.pallas_call(
            functools.partial(_rows_kernel, n_terms=n_terms),
            out_shape=jax.ShapeDtypeStruct((M, D), x.dtype),
            grid_spec=pltpu.PrefetchScalarGridSpec(
                num_scalar_prefetch=0,
                grid=(pl.cdiv(M, TM),),
                in_specs=[pl.BlockSpec((TM, D), lambda i: (i, 0))],
                out_specs=pl.BlockSpec((TM, D), lambda i: (i, 0)),
            ),
            compiler_params=cparams,
        )(x2d)

    return out2d.reshape(orig_shape)


def _softmax_taylor_ref(x: jax.Array, dim: int = -1, n_terms: int = 3) -> jax.Array:
    # Pure-JAX reference mirroring the torch code.
    x = x - jnp.max(x, axis=dim, keepdims=True)
    taylor = jnp.ones_like(x)
    for k in range(n_terms - 1, 0, -1):
        taylor = taylor * x / float(k) + 1.0
    taylor = taylor / jnp.sum(taylor, axis=dim, keepdims=True)
    return jnp.clip(taylor, 1e-06, 1.0 - 1e-06)


if __name__ == "__main__":
    # SoftmaxTaylor has no learnable parameters (dim=-1, n_terms=3).
    key = jax.random.PRNGKey(0)
    # NCHW-style input [B, C, H, W]; softmax along W.
    x = jax.random.normal(key, (2, 4, 16, 16), dtype=jnp.float32)

    out = softmax_taylor_pallas(x, dim=-1, n_terms=3)
    out = jax.block_until_ready(out)

    ref = _softmax_taylor_ref(x, dim=-1, n_terms=3)
    assert out.shape == x.shape and out.dtype == x.dtype
    assert jnp.allclose(out, ref, atol=1e-5, rtol=1e-5), "mismatch vs reference"

    print("KERNEL_OK")
</pallas_src>

<mosaic_0001>
module attributes {stable_mosaic.version = 11 : i64} {
  func.func @_packed_kernel(%arg0: i32, %arg1: memref<16x128xf32, #tpu.memory_space<vmem>>, %arg2: memref<16x128xf32, #tpu.memory_space<vmem>>) attributes {dimension_semantics = [#tpu.dimension_semantics<parallel>], iteration_bounds = array<i64: 1>, scalar_prefetch = 0 : i64, scratch_operands = 0 : i64, tpu.core_type = #tpu.core_type<tc>, window_params = [{transform_indices = @transform_0, window_bounds = array<i64: 16, 128>}, {transform_indices = @transform_1, window_bounds = array<i64: 16, 128>}]} {
    %c0 = arith.constant 0 : index
    %c0_0 = arith.constant 0 : index
    %0 = vector.load %arg1[%c0, %c0_0] : memref<16x128xf32, #tpu.memory_space<vmem>>, vector<16x128xf32>
    %1 = tpu.iota {dimensions = array<i32: 1>} : vector<16x128xi32>
    %c127_i32 = arith.constant 127 : i32
    %2 = tpu.dynamic_rotate %0 by %c127_i32 dim 1 : vector<16x128xf32>, i32 -> vector<16x128xf32>
    %c1_i32 = arith.constant 1 : i32
    %3 = tpu.dynamic_rotate %0 by %c1_i32 dim 1 : vector<16x128xf32>, i32 -> vector<16x128xf32>
    %c1_i32_1 = arith.constant 1 : i32
    %4 = vector.broadcast %c1_i32_1 : i32 to vector<16x128xi32>
    %5 = arith.andi %1, %4 : vector<16x128xi32>
    %c0_i32 = arith.constant 0 : i32
    %6 = vector.broadcast %c0_i32 : i32 to vector<16x128xi32>
    %7 = arith.cmpi eq, %5, %6 : vector<16x128xi32>
    %8 = arith.select %7, %2, %3 : vector<16x128xi1>, vector<16x128xf32>
    %9 = arith.maximumf %0, %8 : vector<16x128xf32>
    %c126_i32 = arith.constant 126 : i32
    %10 = tpu.dynamic_rotate %9 by %c126_i32 dim 1 : vector<16x128xf32>, i32 -> vector<16x128xf32>
    %c2_i32 = arith.constant 2 : i32
    %11 = tpu.dynamic_rotate %9 by %c2_i32 dim 1 : vector<16x128xf32>, i32 -> vector<16x128xf32>
    %c2_i32_2 = arith.constant 2 : i32
    %12 = vector.broadcast %c2_i32_2 : i32 to vector<16x128xi32>
    %13 = arith.andi %1, %12 : vector<16x128xi32>
    %c0_i32_3 = arith.constant 0 : i32
    %14 = vector.broadcast %c0_i32_3 : i32 to vector<16x128xi32>
    %15 = arith.cmpi eq, %13, %14 : vector<16x128xi32>
    %16 = arith.select %15, %10, %11 : vector<16x128xi1>, vector<16x128xf32>
    %17 = arith.maximumf %9, %16 : vector<16x128xf32>
    %c124_i32 = arith.constant 124 : i32
    %18 = tpu.dynamic_rotate %17 by %c124_i32 dim 1 : vector<16x128xf32>, i32 -> vector<16x128xf32>
    %c4_i32 = arith.constant 4 : i32
    %19 = tpu.dynamic_rotate %17 by %c4_i32 dim 1 : vector<16x128xf32>, i32 -> vector<16x128xf32>
    %c4_i32_4 = arith.constant 4 : i32
    %20 = vector.broadcast %c4_i32_4 : i32 to vector<16x128xi32>
    %21 = arith.andi %1, %20 : vector<16x128xi32>
    %c0_i32_5 = arith.constant 0 : i32
    %22 = vector.broadcast %c0_i32_5 : i32 to vector<16x128xi32>
    %23 = arith.cmpi eq, %21, %22 : vector<16x128xi32>
    %24 = arith.select %23, %18, %19 : vector<16x128xi1>, vector<16x128xf32>
    %25 = arith.maximumf %17, %24 : vector<16x128xf32>
    %c120_i32 = arith.constant 120 : i32
    %26 = tpu.dynamic_rotate %25 by %c120_i32 dim 1 : vector<16x128xf32>, i32 -> vector<16x128xf32>
    %c8_i32 = arith.constant 8 : i32
    %27 = tpu.dynamic_rotate %25 by %c8_i32 dim 1 : vector<16x128xf32>, i32 -> vector<16x128xf32>
    %c8_i32_6 = arith.constant 8 : i32
    %28 = vector.broadcast %c8_i32_6 : i32 to vector<16x128xi32>
    %29 = arith.andi %1, %28 : vector<16x128xi32>
    %c0_i32_7 = arith.constant 0 : i32
    %30 = vector.broadcast %c0_i32_7 : i32 to vector<16x128xi32>
    %31 = arith.cmpi eq, %29, %30 : vector<16x128xi32>
    %32 = arith.select %31, %26, %27 : vector<16x128xi1>, vector<16x128xf32>
    %33 = arith.maximumf %25, %32 : vector<16x128xf32>
    %34 = arith.subf %0, %33 : vector<16x128xf32>
    %cst = arith.constant 1.000000e+00 : f32
    %35 = vector.broadcast %cst : f32 to vector<16x128xf32>
    %cst_8 = arith.constant 5.000000e-01 : f32
    %36 = vector.broadcast %cst_8 : f32 to vector<16x128xf32>
    %37 = arith.mulf %34, %36 : vector<16x128xf32>
    %38 = arith.mulf %35, %37 : vector<16x128xf32>
    %cst_9 = arith.constant 1.000000e+00 : f32
    %39 = vector.broadcast %cst_9 : f32 to vector<16x128xf32>
    %40 = arith.addf %38, %39 : vector<16x128xf32>
    %cst_10 = arith.constant 1.000000e+00 : f32
    %41 = vector.broadcast %cst_10 : f32 to vector<16x128xf32>
    %42 = arith.mulf %34, %41 : vector<16x128xf32>
    %43 = arith.mulf %40, %42 : vector<16x128xf32>
    %cst_11 = arith.constant 1.000000e+00 : f32
    %44 = vector.broadcast %cst_11 : f32 to vector<16x128xf32>
    %45 = arith.addf %43, %44 : vector<16x128xf32>
    %46 = tpu.iota {dimensions = array<i32: 1>} : vector<16x128xi32>
    %c127_i32_12 = arith.constant 127 : i32
    %47 = tpu.dynamic_rotate %45 by %c127_i32_12 dim 1 : vector<16x128xf32>, i32 -> vector<16x128xf32>
    %c1_i32_13 = arith.constant 1 : i32
    %48 = tpu.dynamic_rotate %45 by %c1_i32_13 dim 1 : vector<16x128xf32>, i32 -> vector<16x128xf32>
    %c1_i32_14 = arith.constant 1 : i32
    %49 = vector.broadcast %c1_i32_14 : i32 to vector<16x128xi32>
    %50 = arith.andi %46, %49 : vector<16x128xi32>
    %c0_i32_15 = arith.constant 0 : i32
    %51 = vector.broadcast %c0_i32_15 : i32 to vector<16x128xi32>
    %52 = arith.cmpi eq, %50, %51 : vector<16x128xi32>
    %53 = arith.select %52, %47, %48 : vector<16x128xi1>, vector<16x128xf32>
    %54 = arith.addf %45, %53 : vector<16x128xf32>
    %c126_i32_16 = arith.constant 126 : i32
    %55 = tpu.dynamic_rotate %54 by %c126_i32_16 dim 1 : vector<16x128xf32>, i32 -> vector<16x128xf32>
    %c2_i32_17 = arith.constant 2 : i32
    %56 = tpu.dynamic_rotate %54 by %c2_i32_17 dim 1 : vector<16x128xf32>, i32 -> vector<16x128xf32>
    %c2_i32_18 = arith.constant 2 : i32
    %57 = vector.broadcast %c2_i32_18 : i32 to vector<16x128xi32>
    %58 = arith.andi %46, %57 : vector<16x128xi32>
    %c0_i32_19 = arith.constant 0 : i32
    %59 = vector.broadcast %c0_i32_19 : i32 to vector<16x128xi32>
    %60 = arith.cmpi eq, %58, %59 : vector<16x128xi32>
    %61 = arith.select %60, %55, %56 : vector<16x128xi1>, vector<16x128xf32>
    %62 = arith.addf %54, %61 : vector<16x128xf32>
    %c124_i32_20 = arith.constant 124 : i32
    %63 = tpu.dynamic_rotate %62 by %c124_i32_20 dim 1 : vector<16x128xf32>, i32 -> vector<16x128xf32>
    %c4_i32_21 = arith.constant 4 : i32
    %64 = tpu.dynamic_rotate %62 by %c4_i32_21 dim 1 : vector<16x128xf32>, i32 -> vector<16x128xf32>
    %c4_i32_22 = arith.constant 4 : i32
    %65 = vector.broadcast %c4_i32_22 : i32 to vector<16x128xi32>
    %66 = arith.andi %46, %65 : vector<16x128xi32>
    %c0_i32_23 = arith.constant 0 : i32
    %67 = vector.broadcast %c0_i32_23 : i32 to vector<16x128xi32>
    %68 = arith.cmpi eq, %66, %67 : vector<16x128xi32>
    %69 = arith.select %68, %63, %64 : vector<16x128xi1>, vector<16x128xf32>
    %70 = arith.addf %62, %69 : vector<16x128xf32>
    %c120_i32_24 = arith.constant 120 : i32
    %71 = tpu.dynamic_rotate %70 by %c120_i32_24 dim 1 : vector<16x128xf32>, i32 -> vector<16x128xf32>
    %c8_i32_25 = arith.constant 8 : i32
    %72 = tpu.dynamic_rotate %70 by %c8_i32_25 dim 1 : vector<16x128xf32>, i32 -> vector<16x128xf32>
    %c8_i32_26 = arith.constant 8 : i32
    %73 = vector.broadcast %c8_i32_26 : i32 to vector<16x128xi32>
    %74 = arith.andi %46, %73 : vector<16x128xi32>
    %c0_i32_27 = arith.constant 0 : i32
    %75 = vector.broadcast %c0_i32_27 : i32 to vector<16x128xi32>
    %76 = arith.cmpi eq, %74, %75 : vector<16x128xi32>
    %77 = arith.select %76, %71, %72 : vector<16x128xi1>, vector<16x128xf32>
    %78 = arith.addf %70, %77 : vector<16x128xf32>
    %79 = tpu.reciprocal %78 {approx = true} : vector<16x128xf32> -> vector<16x128xf32>
    %80 = arith.mulf %78, %79 : vector<16x128xf32>
    %cst_28 = arith.constant 2.000000e+00 : f32
    %81 = vector.broadcast %cst_28 : f32 to vector<16x128xf32>
    %82 = arith.subf %81, %80 : vector<16x128xf32>
    %83 = arith.mulf %79, %82 : vector<16x128xf32>
    %84 = arith.mulf %45, %83 : vector<16x128xf32>
    %cst_29 = arith.constant 9.99999997E-7 : f32
    %cst_30 = arith.constant 0.999998986 : f32
    %85 = vector.broadcast %cst_29 : f32 to vector<16x128xf32>
    %86 = arith.maximumf %85, %84 : vector<16x128xf32>
    %87 = vector.broadcast %cst_30 : f32 to vector<16x128xf32>
    %88 = arith.minimumf %87, %86 : vector<16x128xf32>
    %c0_31 = arith.constant 0 : index
    %c0_32 = arith.constant 0 : index
    %89 = vector.load %arg2[%c0_31, %c0_32] : memref<16x128xf32, #tpu.memory_space<vmem>>, vector<16x128xf32>
    tpu.vector_store %arg2[%c0_31, %c0_32], %88 {strides = array<i32>} : memref<16x128xf32, #tpu.memory_space<vmem>>, vector<16x128xf32>,
    return
  }
  func.func @transform_0(%arg0: i32) -> (i32, i32) {
    %c0_i32 = arith.constant 0 : i32
    %c0_i32_0 = arith.constant 0 : i32
    return %arg0, %c0_i32 : i32, i32
  }
  func.func @transform_1(%arg0: i32) -> (i32, i32) {
    %c0_i32 = arith.constant 0 : i32
    %c0_i32_0 = arith.constant 0 : i32
    return %arg0, %c0_i32 : i32, i32
  }
}

</mosaic_0001>

<llo_original>
// kernel: tpu_custom_call.1
$region0: #{tpu_custom_call.1}
  #allocation0 [shape = 'u32[]', space=smem, size = 0x4, offset = 0x4, fixed_abs, tag = 'smem constant byte address 0x4 - core index']
  #allocation1 [shape = 'u32[144,128]{1,0:T(1,128)}', space=vmem, size = 0x12000, scoped, tag = 'internal scratch']
  %s0 = inlined_call_operand.hbm [shape: f32[16,128], index: 0, kind: input, shape index: {}]
  %s1 = inlined_call_operand.hbm [shape: f32[16,128], index: 1, kind: output, shape index: {}]
  %s2 = sld [smem:[#allocation0]]
  $region18: #{tpu_custom_call.1} parent=0
    _
  %s4 = ssub.s32 1, %s2
  %s5 = scalar_select 0, %s4, %s2
  $region1: #{tpu_custom_call.1} parent=0
    #allocation2 [shape = 'u8[8192]{0}', space=vmem, size = 0x2000, scoped, tag = 'input window, operand 0, single buffered']
    #allocation3 [shape = 's32[1]{0}', space=sflag, size = 0x4, scoped, tag = 'scoped memory for tpu_custom_call.1']
    #allocation4 [shape = 's32[1]{0}', space=sflag, size = 0x4, scoped, tag = 'scoped memory for tpu_custom_call.1']
    #allocation5 [shape = 'u8[8192]{0}', space=vmem, size = 0x2000, scoped, tag = 'output window, operand 0, single buffered']
    %6 = vsyncpa [#allocation3], 0
    %7 = vsyncpa [#allocation4], 0
    // Predicated region
    $region2: #{tpu_custom_call.1} parent=1 // pred_check
      _
    $region3: #{tpu_custom_call.1} parent=1 // pred_check_branch
      %9 = sbr.rel (0) target = $region5
    $region4: #{tpu_custom_call.1} parent=1 // pred_region
      %s11 = ssub.s32 256, 256
      %12 = vsyncadd [#allocation3], %s11
      %s13 = sshll.u32 [#allocation2], 4
      %s14 = int_to_ptr.vmem [resolvable:$true] %s13
      %19 = dma.hbm_to_vmem [thread:$0]  %s0, 256, %s14, [#allocation3], 128, 128, 8
    $region5: #{tpu_custom_call.1} parent=1 // pred_fallthru
      _
    // Predicated region
    $region6: #{tpu_custom_call.1} parent=1 // pred_check
      _
    $region7: #{tpu_custom_call.1} parent=1 // pred_check_branch
      %21 = sbr.rel (0) target = $region9
    $region8: #{tpu_custom_call.1} parent=1 // pred_region
      %22 = dma.done [#allocation3], 256
    $region9: #{tpu_custom_call.1} parent=1 // pred_fallthru
      _
    %v23 = vld [vmem:[#allocation2] sm:$0xff]
    %v24 = vld [vmem:[#allocation2 + $0x8] sm:$0xff]
    %v25 = vlaneseq
    %v26 = vand.u32 %v25, 127
    %27 = vrot.lane.b32.xlu0 %v23, 127
    %v28 = vpop.permute.xlu0 %27
    %29 = vrot.lane.b32.xlu0 %v24, 127
    %v30 = vpop.permute.xlu0 %29
    %31 = vrot.lane.b32.xlu0 %v23, 1
    %v32 = vpop.permute.xlu0 %31
    %33 = vrot.lane.b32.xlu0 %v24, 1
    %v34 = vpop.permute.xlu0 %33
    %v35 = vand.u32 %v26, 1
    %vm36 = vcmp.eq.s32.totalorder %v35, 0
    %v37 = vsel %vm36, %v28, %v32
    %v38 = vsel %vm36, %v30, %v34
    %v39 = vmax.f32 %v23, %v37
    %v40 = vmax.f32 %v24, %v38
    %41 = vrot.lane.b32.xlu0 %v39, 126
    %v42 = vpop.permute.xlu0 %41
    %43 = vrot.lane.b32.xlu0 %v40, 126
    %v44 = vpop.permute.xlu0 %43
    %45 = vrot.lane.b32.xlu0 %v39, 2
    %v46 = vpop.permute.xlu0 %45
    %47 = vrot.lane.b32.xlu0 %v40, 2
    %v48 = vpop.permute.xlu0 %47
    %v49 = vand.u32 %v26, 2
    %vm50 = vcmp.eq.s32.totalorder %v49, 0
    %v51 = vsel %vm50, %v42, %v46
    %v52 = vsel %vm50, %v44, %v48
    %v53 = vmax.f32 %v39, %v51
    %v54 = vmax.f32 %v40, %v52
    %55 = vrot.lane.b32.xlu0 %v53, 124
    %v56 = vpop.permute.xlu0 %55
    %57 = vrot.lane.b32.xlu0 %v54, 124
    %v58 = vpop.permute.xlu0 %57
    %59 = vrot.lane.b32.xlu0 %v53, 4
    %v60 = vpop.permute.xlu0 %59
    %61 = vrot.lane.b32.xlu0 %v54, 4
    %v62 = vpop.permute.xlu0 %61
    %v63 = vand.u32 %v26, 4
    %vm64 = vcmp.eq.s32.totalorder %v63, 0
    %v65 = vsel %vm64, %v56, %v60
    %v66 = vsel %vm64, %v58, %v62
    %v67 = vmax.f32 %v53, %v65
    %v68 = vmax.f32 %v54, %v66
    %69 = vrot.lane.b32.xlu0 %v67, 120
    %v70 = vpop.permute.xlu0 %69
    %71 = vrot.lane.b32.xlu0 %v68, 120
    %v72 = vpop.permute.xlu0 %71
    %73 = vrot.lane.b32.xlu0 %v67, 8
    %v74 = vpop.permute.xlu0 %73
    %75 = vrot.lane.b32.xlu0 %v68, 8
    %v76 = vpop.permute.xlu0 %75
    %v77 = vand.u32 %v26, 8
    %vm78 = vcmp.eq.s32.totalorder %v77, 0
    %v79 = vsel %vm78, %v70, %v74
    %v80 = vsel %vm78, %v72, %v76
    %v81 = vmax.f32 %v67, %v79
    %v82 = vmax.f32 %v68, %v80
    %v83 = vsub.f32 %v23, %v81
    %v84 = vsub.f32 %v24, %v82
    %v85 = vmul.f32 %v83, 0.5
    %v86 = vmul.f32 %v84, 0.5
    %v87 = vadd.f32 %v85, 1.0
    %v88 = vadd.f32 %v86, 1.0
    %v89 = vmul.f32 %v87, %v83
    %v90 = vmul.f32 %v88, %v84
    %v91 = vadd.f32 %v89, 1.0
    %v92 = vadd.f32 %v90, 1.0
    %93 = vrot.lane.b32.xlu0 %v91, 127
    %v94 = vpop.permute.xlu0 %93
    %95 = vrot.lane.b32.xlu0 %v92, 127
    %v96 = vpop.permute.xlu0 %95
    %97 = vrot.lane.b32.xlu0 %v91, 1
    %v98 = vpop.permute.xlu0 %97
    %99 = vrot.lane.b32.xlu0 %v92, 1
    %v100 = vpop.permute.xlu0 %99
    %v101 = vsel %vm36, %v94, %v98
    %v102 = vsel %vm36, %v96, %v100
    %v103 = vadd.f32 %v91, %v101
    %v104 = vadd.f32 %v92, %v102
    %105 = vrot.lane.b32.xlu0 %v103, 126
    %v106 = vpop.permute.xlu0 %105
    %107 = vrot.lane.b32.xlu0 %v104, 126
    %v108 = vpop.permute.xlu0 %107
    %109 = vrot.lane.b32.xlu0 %v103, 2
    %v110 = vpop.permute.xlu0 %109
    %111 = vrot.lane.b32.xlu0 %v104, 2
    %v112 = vpop.permute.xlu0 %111
    %v113 = vsel %vm50, %v106, %v110
    %v114 = vsel %vm50, %v108, %v112
    %v115 = vadd.f32 %v103, %v113
    %v116 = vadd.f32 %v104, %v114
    %117 = vrot.lane.b32.xlu0 %v115, 124
    %v118 = vpop.permute.xlu0 %117
    %119 = vrot.lane.b32.xlu0 %v116, 124
    %v120 = vpop.permute.xlu0 %119
    %121 = vrot.lane.b32.xlu0 %v115, 4
    %v122 = vpop.permute.xlu0 %121
    %123 = vrot.lane.b32.xlu0 %v116, 4
    %v124 = vpop.permute.xlu0 %123
    %v125 = vsel %vm64, %v118, %v122
    %v126 = vsel %vm64, %v120, %v124
    %v127 = vadd.f32 %v115, %v125
    %v128 = vadd.f32 %v116, %v126
    %129 = vrot.lane.b32.xlu0 %v127, 120
    %v130 = vpop.permute.xlu0 %129
    %131 = vrot.lane.b32.xlu0 %v128, 120
    %v132 = vpop.permute.xlu0 %131
    %133 = vrot.lane.b32.xlu0 %v127, 8
    %v134 = vpop.permute.xlu0 %133
    %135 = vrot.lane.b32.xlu0 %v128, 8
    %v136 = vpop.permute.xlu0 %135
    %v137 = vsel %vm78, %v130, %v134
    %v138 = vsel %vm78, %v132, %v136
    %v139 = vadd.f32 %v127, %v137
    %v140 = vadd.f32 %v128, %v138
    %v141 = vrcp.pop %v139
    %v142 = vrcp.pop %v140
    %v143 = vmul.f32 %v139, %v141
    %v144 = vmul.f32 %v140, %v142
    %v145 = vsub.f32 2.0, %v143
    %v146 = vsub.f32 2.0, %v144
    %v147 = vmul.f32 %v141, %v145
    %v148 = vmul.f32 %v142, %v146
    %v149 = vmul.f32 %v91, %v147
    %v150 = vmul.f32 %v92, %v148
    %v151 = vmax.f32 %v149, 1e-06
    %v152 = vmax.f32 %v150, 1e-06
    %v153 = vmin.f32 %v151, 0.999999
    %v154 = vmin.f32 %v152, 0.999999
    %155 = vst [vmem:[#allocation5] sm:$0xff] %v153
    %156 = vst [vmem:[#allocation5 + $0x8] sm:$0xff] %v154
    // Predicated region
    $region10: #{tpu_custom_call.1} parent=1 // pred_check
      _
    $region11: #{tpu_custom_call.1} parent=1 // pred_check_branch
      %158 = sbr.rel (0) target = $region13
    $region12: #{tpu_custom_call.1} parent=1 // pred_region
      %s160 = ssub.s32 256, 256
      %161 = vsyncadd [#allocation4], %s160
      %s162 = sshll.u32 [#allocation5], 4
      %s163 = int_to_ptr.vmem [resolvable:$true] %s162
      %168 = dma.vmem_to_hbm [thread:$0]  %s163, 256, %s1, [#allocation4], 128, 128, 8
    $region13: #{tpu_custom_call.1} parent=1 // pred_fallthru
      _
    // Predicated region
    $region14: #{tpu_custom_call.1} parent=1 // pred_check
      _
    $region15: #{tpu_custom_call.1} parent=1 // pred_check_branch
      %170 = sbr.rel (0) target = $region17
    $region16: #{tpu_custom_call.1} parent=1 // pred_region
      %171 = dma.done [#allocation4], 256
    $region17: #{tpu_custom_call.1} parent=1 // pred_fallthru
      _
    %172 = vsyncpa [#allocation3], 1
    %173 = vsyncpa [#allocation4], 1

</llo_original>
